<compile_context>
chip_gen: v7x
topology: tpu7x:2x2x1
jax: 0.10.0
libtpu: 0.0.40
codegen_flags: <defaults>
</compile_context>

<pallas_src>
import jax
import jax.numpy as jnp
from jax.experimental import pallas as pl
from jax.experimental.pallas import tpu as pltpu

_TILE = 512  # A is streamed in (TILE x TILE) bf16 blocks (~0.5 MiB each).


def _layer1_kernel(a_ref, xs_ref, x_ref, d_ref, w1_ref, w2_ref, hw2_ref, acc_ref):
    """Accumulate A @ (d*X) over K; at the last K step finish layer 1 and
    pre-multiply by W2:  hw2 = relu((x + d * acc) @ W1) @ W2."""
    k = pl.program_id(1)

    @pl.when(k == 0)
    def _():
        acc_ref[...] = jnp.zeros_like(acc_ref)

    acc_ref[...] += jnp.dot(a_ref[...].astype(jnp.float32), xs_ref[...],
                            preferred_element_type=jnp.float32)

    @pl.when(k == pl.num_programs(1) - 1)
    def _():
        a_x = d_ref[...] * acc_ref[...]                         # (tm, Cin)
        h = jnp.dot(x_ref[...] + a_x, w1_ref[...],
                    preferred_element_type=jnp.float32)
        h = jnp.maximum(h, 0.0)                                 # (tm, Chid)
        hw2_ref[...] = jnp.dot(h, w2_ref[...],
                               preferred_element_type=jnp.float32)


def _layer2_kernel(a_ref, gs_ref, g_ref, d_ref, out_ref, acc_ref):
    """out = g + d * (A @ gs)   with g = H @ W2 and gs = d * g."""
    k = pl.program_id(1)

    @pl.when(k == 0)
    def _():
        acc_ref[...] = jnp.zeros_like(acc_ref)

    acc_ref[...] += jnp.dot(a_ref[...].astype(jnp.float32), gs_ref[...],
                            preferred_element_type=jnp.float32)

    @pl.when(k == pl.num_programs(1) - 1)
    def _():
        out_ref[...] = g_ref[...] + d_ref[...] * acc_ref[...]


def single_param_gcn(x, edge_index_no_loops, deg_inv_sqrt, num_nodes, w1, w2,
                     *, tile=_TILE):
    """x: (N, Cin) f32, edge_index_no_loops: (2, E) i32, deg_inv_sqrt: (N,) f32."""
    n = num_nodes
    cin = x.shape[1]
    hid = w1.shape[1]
    cout = w2.shape[1]

    # Tile / padding choice: single full-size block for small graphs; otherwise
    # pad N to a multiple of `tile` and stream A in (tile x tile) blocks.
    if n <= tile:
        tm = tk = n
        n_pad = n
    else:
        tm = tk = tile
        n_pad = pl.cdiv(n, tile) * tile

    src = edge_index_no_loops[0]
    dst = edge_index_no_loops[1]

    # Glue: dense 0/1 adjacency (message x[src] -> node dst), no self loops.
    # bf16 is exact for {0, 1} and halves the dominant HBM traffic on A.
    # TODO(synk): for genuinely sparse graphs replace this densification with a
    # scalar-prefetch gather / segment-sum kernel instead of a dense matmul.
    a = jnp.zeros((n_pad, n_pad), jnp.bfloat16).at[dst, src].set(1.0)

    d = jnp.zeros((n_pad, 1), jnp.float32).at[:n, 0].set(
        deg_inv_sqrt.astype(jnp.float32))
    xp = jnp.zeros((n_pad, cin), jnp.float32).at[:n].set(x.astype(jnp.float32))
    xs = d * xp                                    # fold D^{-1/2} into X
    w1 = w1.astype(jnp.float32)
    w2 = w2.astype(jnp.float32)

    grid = (n_pad // tm, n_pad // tk)
    cparams = pltpu.CompilerParams(
        dimension_semantics=("parallel", "arbitrary"),
        vmem_limit_bytes=64 * 1024 * 1024)

    a_spec = pl.BlockSpec((tm, tk), lambda i, k: (i, k))
    row_vec = lambda c: pl.BlockSpec((tm, c), lambda i, k: (i, 0))
    k_vec = lambda c: pl.BlockSpec((tk, c), lambda i, k: (k, 0))
    full = lambda r, c: pl.BlockSpec((r, c), lambda i, k: (0, 0))

    # ---- pass 1: hw2 = relu((x + d*(A @ (d*x))) @ W1) @ W2 -----------------
    hw2 = pl.pallas_call(
        _layer1_kernel,
        out_shape=jax.ShapeDtypeStruct((n_pad, cout), jnp.float32),
        grid_spec=pltpu.PrefetchScalarGridSpec(
            num_scalar_prefetch=0,
            grid=grid,
            in_specs=[a_spec, k_vec(cin), row_vec(cin), row_vec(1),
                      full(cin, hid), full(hid, cout)],
            out_specs=row_vec(cout),
            scratch_shapes=[pltpu.VMEM((tm, cin), jnp.float32)]),
        compiler_params=cparams,
    )(a, xs, xp, d, w1, w2)

    # ---- pass 2: out = hw2 + d * (A @ (d * hw2)) ---------------------------
    gs = d * hw2
    out = pl.pallas_call(
        _layer2_kernel,
        out_shape=jax.ShapeDtypeStruct((n_pad, cout), jnp.float32),
        grid_spec=pltpu.PrefetchScalarGridSpec(
            num_scalar_prefetch=0,
            grid=grid,
            in_specs=[a_spec, k_vec(cout), row_vec(cout), row_vec(1)],
            out_specs=row_vec(cout),
            scratch_shapes=[pltpu.VMEM((tm, cout), jnp.float32)]),
        compiler_params=cparams,
    )(a, gs, hw2, d)

    return out[:n]


def reference(x, edge_index, deg_inv_sqrt, num_nodes, w1, w2):
    n = num_nodes
    src, dst = edge_index[0], edge_index[1]
    a = jnp.zeros((n, n), jnp.float32).at[dst, src].set(1.0)
    a_norm = deg_inv_sqrt[:, None] * a * deg_inv_sqrt[None, :]
    h = jnp.maximum((x + a_norm @ x) @ w1, 0.0)
    return (h + a_norm @ h) @ w2


if __name__ == "__main__":
    # Small shapes consistent with the module's forward.
    num_nodes = 16
    in_channels, hidden_channels, out_channels = 8, 16, 8

    key = jax.random.PRNGKey(0)
    kx, kw1, kw2 = jax.random.split(key, 3)

    # Node features.
    x = jax.random.normal(kx, (num_nodes, in_channels), jnp.float32)

    # Deterministic bidirectional ring graph (no self loops).
    idx = jnp.arange(num_nodes, dtype=jnp.int32)
    nxt = (idx + 1) % num_nodes
    src = jnp.concatenate([idx, nxt])
    dst = jnp.concatenate([nxt, idx])
    edge_index_no_loops = jnp.stack([src, dst])            # (2, E)

    # Degree (without self loops) -> d^{-1/2}, clamped to avoid div-by-zero.
    deg = jnp.zeros((num_nodes,), jnp.float32).at[dst].add(1.0)
    deg_inv_sqrt = 1.0 / jnp.sqrt(jnp.maximum(deg, 1.0))

    # Parameters, matching nn.Parameter(torch.randn(in, out) * 0.01).
    w1 = 0.01 * jax.random.normal(kw1, (in_channels, hidden_channels), jnp.float32)
    w2 = 0.01 * jax.random.normal(kw2, (hidden_channels, out_channels), jnp.float32)

    out = single_param_gcn(x, edge_index_no_loops, deg_inv_sqrt, num_nodes, w1, w2)
    out = jax.block_until_ready(out)

    ref = reference(x, edge_index_no_loops, deg_inv_sqrt, num_nodes, w1, w2)
    assert out.shape == (num_nodes, out_channels)
    assert jnp.allclose(out, ref, atol=1e-5, rtol=1e-4)

    print("KERNEL_OK")
</pallas_src>

<mosaic_0001>
module attributes {stable_mosaic.version = 11 : i64} {
  func.func @_layer1_kernel(%arg0: i32, %arg1: i32, %arg2: memref<16x16xbf16, #tpu.memory_space<vmem>>, %arg3: memref<16x8xf32, #tpu.memory_space<vmem>>, %arg4: memref<16x8xf32, #tpu.memory_space<vmem>>, %arg5: memref<16x1xf32, #tpu.memory_space<vmem>>, %arg6: memref<8x16xf32, #tpu.memory_space<vmem>>, %arg7: memref<16x8xf32, #tpu.memory_space<vmem>>, %arg8: memref<16x8xf32, #tpu.memory_space<vmem>>, %arg9: memref<16x8xf32, #tpu.memory_space<vmem>>) attributes {dimension_semantics = [#tpu.dimension_semantics<parallel>, #tpu.dimension_semantics<arbitrary>], iteration_bounds = array<i64: 1, 1>, scalar_prefetch = 0 : i64, scratch_operands = 1 : i64, tpu.core_type = #tpu.core_type<tc>, window_params = [{transform_indices = @transform_0, window_bounds = array<i64: 16, 16>}, {transform_indices = @transform_1, window_bounds = array<i64: 16, 8>}, {transform_indices = @transform_2, window_bounds = array<i64: 16, 8>}, {transform_indices = @transform_3, window_bounds = array<i64: 16, 1>}, {pipeline_mode = #tpu.pipeline_mode<synchronous>, transform_indices = @transform_4, window_bounds = array<i64: 8, 16>}, {pipeline_mode = #tpu.pipeline_mode<synchronous>, transform_indices = @transform_5, window_bounds = array<i64: 16, 8>}, {transform_indices = @transform_6, window_bounds = array<i64: 16, 8>}]} {
    %c0_i32 = arith.constant 0 : i32
    %0 = arith.cmpi eq, %arg1, %c0_i32 : i32
    %1 = arith.extui %0 : i1 to i32
    %c0_i32_0 = arith.constant 0 : i32
    %2 = arith.cmpi ne, %1, %c0_i32_0 : i32
    scf.if %2 {
      %cst_10 = arith.constant 0.000000e+00 : f32
      %13 = vector.broadcast %cst_10 : f32 to vector<16x8xf32>
      %c0_11 = arith.constant 0 : index
      %c0_12 = arith.constant 0 : index
      %14 = vector.load %arg9[%c0_11, %c0_12] : memref<16x8xf32, #tpu.memory_space<vmem>>, vector<16x8xf32>
      tpu.vector_store %arg9[%c0_11, %c0_12], %13 {strides = array<i32>} : memref<16x8xf32, #tpu.memory_space<vmem>>, vector<16x8xf32>,
    } else {
    }
    %c0 = arith.constant 0 : index
    %c0_1 = arith.constant 0 : index
    %3 = vector.load %arg9[%c0, %c0_1] : memref<16x8xf32, #tpu.memory_space<vmem>>, vector<16x8xf32>
    %c0_2 = arith.constant 0 : index
    %c0_3 = arith.constant 0 : index
    %4 = vector.load %arg2[%c0_2, %c0_3] : memref<16x16xbf16, #tpu.memory_space<vmem>>, vector<16x16xbf16>
    %5 = arith.extf %4 : vector<16x16xbf16> to vector<16x16xf32>
    %c0_4 = arith.constant 0 : index
    %c0_5 = arith.constant 0 : index
    %6 = vector.load %arg3[%c0_4, %c0_5] : memref<16x8xf32, #tpu.memory_space<vmem>>, vector<16x8xf32>
    %cst = arith.constant dense<0.000000e+00> : vector<16x8xf32>
    %7 = tpu.matmul %5, %6, %cst {dimension_numbers = #tpu.dot_dimension_numbers<[1], [0], [0], [1], [0, 0, 1, 1], [], []>} : vector<16x16xf32>, vector<16x8xf32>, vector<16x8xf32> -> vector<16x8xf32>
    %8 = arith.addf %3, %7 : vector<16x8xf32>
    %c0_6 = arith.constant 0 : index
    %c0_7 = arith.constant 0 : index
    %9 = vector.load %arg9[%c0_6, %c0_7] : memref<16x8xf32, #tpu.memory_space<vmem>>, vector<16x8xf32>
    tpu.vector_store %arg9[%c0_6, %c0_7], %8 {strides = array<i32>} : memref<16x8xf32, #tpu.memory_space<vmem>>, vector<16x8xf32>,
    %c0_i32_8 = arith.constant 0 : i32
    %10 = arith.cmpi eq, %arg1, %c0_i32_8 : i32
    %11 = arith.extui %10 : i1 to i32
    %c0_i32_9 = arith.constant 0 : i32
    %12 = arith.cmpi ne, %11, %c0_i32_9 : i32
    scf.if %12 {
      %c0_10 = arith.constant 0 : index
      %c0_11 = arith.constant 0 : index
      %13 = vector.load %arg5[%c0_10, %c0_11] : memref<16x1xf32, #tpu.memory_space<vmem>>, vector<16x1xf32>
      %c0_12 = arith.constant 0 : index
      %c0_13 = arith.constant 0 : index
      %14 = vector.load %arg9[%c0_12, %c0_13] : memref<16x8xf32, #tpu.memory_space<vmem>>, vector<16x8xf32>
      %15 = vector.broadcast %13 : vector<16x1xf32> to vector<16x8xf32>
      %16 = arith.mulf %15, %14 : vector<16x8xf32>
      %c0_14 = arith.constant 0 : index
      %c0_15 = arith.constant 0 : index
      %17 = vector.load %arg4[%c0_14, %c0_15] : memref<16x8xf32, #tpu.memory_space<vmem>>, vector<16x8xf32>
      %18 = arith.addf %17, %16 : vector<16x8xf32>
      %c0_16 = arith.constant 0 : index
      %c0_17 = arith.constant 0 : index
      %19 = vector.load %arg6[%c0_16, %c0_17] : memref<8x16xf32, #tpu.memory_space<vmem>>, vector<8x16xf32>
      %cst_18 = arith.constant dense<0.000000e+00> : vector<16x16xf32>
      %20 = tpu.matmul %18, %19, %cst_18 {dimension_numbers = #tpu.dot_dimension_numbers<[1], [0], [0], [1], [0, 0, 1, 1], [], []>} : vector<16x8xf32>, vector<8x16xf32>, vector<16x16xf32> -> vector<16x16xf32>
      %cst_19 = arith.constant 0.000000e+00 : f32
      %21 = vector.broadcast %cst_19 : f32 to vector<16x16xf32>
      %22 = arith.maximumf %20, %21 : vector<16x16xf32>
      %c0_20 = arith.constant 0 : index
      %c0_21 = arith.constant 0 : index
      %23 = vector.load %arg7[%c0_20, %c0_21] : memref<16x8xf32, #tpu.memory_space<vmem>>, vector<16x8xf32>
      %cst_22 = arith.constant dense<0.000000e+00> : vector<16x8xf32>
      %24 = tpu.matmul %22, %23, %cst_22 {dimension_numbers = #tpu.dot_dimension_numbers<[1], [0], [0], [1], [0, 0, 1, 1], [], []>} : vector<16x16xf32>, vector<16x8xf32>, vector<16x8xf32> -> vector<16x8xf32>
      %c0_23 = arith.constant 0 : index
      %c0_24 = arith.constant 0 : index
      %25 = vector.load %arg8[%c0_23, %c0_24] : memref<16x8xf32, #tpu.memory_space<vmem>>, vector<16x8xf32>
      tpu.vector_store %arg8[%c0_23, %c0_24], %24 {strides = array<i32>} : memref<16x8xf32, #tpu.memory_space<vmem>>, vector<16x8xf32>,
    } else {
    }
    return
  }
  func.func @transform_0(%arg0: i32, %arg1: i32) -> (i32, i32) {
    %c0_i32 = arith.constant 0 : i32
    return %arg0, %arg1 : i32, i32
  }
  func.func @transform_1(%arg0: i32, %arg1: i32) -> (i32, i32) {
    %c0_i32 = arith.constant 0 : i32
    %c0_i32_0 = arith.constant 0 : i32
    return %arg1, %c0_i32 : i32, i32
  }
  func.func @transform_2(%arg0: i32, %arg1: i32) -> (i32, i32) {
    %c0_i32 = arith.constant 0 : i32
    %c0_i32_0 = arith.constant 0 : i32
    return %arg0, %c0_i32 : i32, i32
  }
  func.func @transform_3(%arg0: i32, %arg1: i32) -> (i32, i32) {
    %c0_i32 = arith.constant 0 : i32
    %c0_i32_0 = arith.constant 0 : i32
    return %arg0, %c0_i32 : i32, i32
  }
  func.func @transform_4(%arg0: i32, %arg1: i32) -> (i32, i32) {
    %c0_i32 = arith.constant 0 : i32
    %c0_i32_0 = arith.constant 0 : i32
    %c0_i32_1 = arith.constant 0 : i32
    return %c0_i32, %c0_i32_0 : i32, i32
  }
  func.func @transform_5(%arg0: i32, %arg1: i32) -> (i32, i32) {
    %c0_i32 = arith.constant 0 : i32
    %c0_i32_0 = arith.constant 0 : i32
    %c0_i32_1 = arith.constant 0 : i32
    return %c0_i32, %c0_i32_0 : i32, i32
  }
  func.func @transform_6(%arg0: i32, %arg1: i32) -> (i32, i32) {
    %c0_i32 = arith.constant 0 : i32
    %c0_i32_0 = arith.constant 0 : i32
    return %arg0, %c0_i32 : i32, i32
  }
}

</mosaic_0001>

<llo_original>
// kernel: tpu_custom_call.1
$region0: #{tpu_custom_call.1}
  #allocation0 [shape = 'u32[]', space=smem, size = 0x4, offset = 0x4, fixed_abs, tag = 'smem constant byte address 0x4 - core index']
  #allocation1 [shape = 'u32[144,128]{1,0:T(1,128)}', space=vmem, size = 0x12000, scoped, tag = 'internal scratch']
  #allocation2 [shape = 'f32[16,8]{1,0:T(8,128)}', space=vmem, size = 0x2000, scoped, tag = 'scratch operand']
  %s0 = inlined_call_operand.hbm [shape: bf16[16,16], index: 0, kind: input, shape index: {}]
  %s1 = inlined_call_operand.hbm [shape: f32[16,8], index: 1, kind: input, shape index: {}]
  %s2 = inlined_call_operand.hbm [shape: f32[16,8], index: 2, kind: input, shape index: {}]
  %s3 = inlined_call_operand.hbm [shape: f32[16,1], index: 3, kind: input, shape index: {}]
  %s4 = inlined_call_operand.hbm [shape: f32[8,16], index: 4, kind: input, shape index: {}]
  %s5 = inlined_call_operand.hbm [shape: f32[16,8], index: 5, kind: input, shape index: {}]
  %s6 = inlined_call_operand.hbm [shape: f32[16,8], index: 6, kind: output, shape index: {}]
  %s7 = sld [smem:[#allocation0]]
  $region66: #{tpu_custom_call.1} parent=0
    _
  %s9 = ssub.s32 1, %s7
  %s10 = scalar_select 0, %s9, %s7
  $region1: #{tpu_custom_call.1} parent=0
    #allocation3 [shape = 'u8[4096]{0}', space=vmem, size = 0x1000, scoped, tag = 'input window, operand 0, single buffered']
    #allocation4 [shape = 's32[1]{0}', space=sflag, size = 0x4, scoped, tag = 'scoped memory for tpu_custom_call.1']
    #allocation5 [shape = 's32[1]{0}', space=sflag, size = 0x4, scoped, tag = 'scoped memory for tpu_custom_call.1']
    #allocation6 [shape = 'u8[8192]{0}', space=vmem, size = 0x2000, scoped, tag = 'input window, operand 1, single buffered']
    #allocation7 [shape = 's32[1]{0}', space=sflag, size = 0x4, scoped, tag = 'scoped memory for tpu_custom_call.1']
    #allocation8 [shape = 'u8[8192]{0}', space=vmem, size = 0x2000, scoped, tag = 'input window, operand 2, single buffered']
    #allocation9 [shape = 'u8[8192]{0}', space=vmem, size = 0x2000, scoped, tag = 'input window, operand 3, single buffered']
    #allocation10 [shape = 's32[1]{0}', space=sflag, size = 0x4, scoped, tag = 'scoped memory for tpu_custom_call.1']
    #allocation11 [shape = 'u8[4096]{0}', space=vmem, size = 0x1000, scoped, tag = 'input window, operand 4, single buffered']
    #allocation12 [shape = 'u8[8192]{0}', space=vmem, size = 0x2000, scoped, tag = 'input window, operand 5, single buffered']
    #allocation13 [shape = 's32[1]{0}', space=sflag, size = 0x4, scoped, tag = 'scoped memory for tpu_custom_call.1']
    #allocation14 [shape = 'u8[8192]{0}', space=vmem, size = 0x2000, scoped, tag = 'output window, operand 0, single buffered']
    %11 = vsyncpa [#allocation4], 0
    %12 = vsyncpa [#allocation7], 0
    %13 = vsyncpa [#allocation10], 0
    %14 = vsyncpa [#allocation13], 0
    %15 = vsyncpa [#allocation5], 0
    // Predicated region
    $region2: #{tpu_custom_call.1} parent=1 // pred_check
      _
    $region3: #{tpu_custom_call.1} parent=1 // pred_check_branch
      %17 = sbr.rel (0) target = $region5
    $region4: #{tpu_custom_call.1} parent=1 // pred_region
      %s19 = ssub.s32 128, 128
      %20 = vsyncadd [#allocation4], %s19
      %s21 = sshll.u32 [#allocation3], 4
      %s22 = int_to_ptr.vmem [resolvable:$true] %s21
      %27 = dma.hbm_to_vmem [thread:$0]  %s0, 128, %s22, [#allocation4], 64, 64, 4
    $region5: #{tpu_custom_call.1} parent=1 // pred_fallthru
      _
    // Predicated region
    $region6: #{tpu_custom_call.1} parent=1 // pred_check
      _
    $region7: #{tpu_custom_call.1} parent=1 // pred_check_branch
      %29 = sbr.rel (0) target = $region9
    $region8: #{tpu_custom_call.1} parent=1 // pred_region
      %s31 = ssub.s32 256, 256
      %32 = vsyncadd [#allocation7], %s31
      %s33 = sshll.u32 [#allocation6], 4
      %s34 = int_to_ptr.vmem [resolvable:$true] %s33
      %39 = dma.hbm_to_vmem [thread:$0]  %s1, 256, %s34, [#allocation7], 128, 128, 8
    $region9: #{tpu_custom_call.1} parent=1 // pred_fallthru
      _
    // Predicated region
    $region10: #{tpu_custom_call.1} parent=1 // pred_check
      _
    $region11: #{tpu_custom_call.1} parent=1 // pred_check_branch
      %41 = sbr.rel (0) target = $region13
    $region12: #{tpu_custom_call.1} parent=1 // pred_region
      %s43 = ssub.s32 256, 256
      %44 = vsyncadd [#allocation7], %s43
      %s45 = sshll.u32 [#allocation8], 4
      %s46 = int_to_ptr.vmem [resolvable:$true] %s45
      %51 = dma.hbm_to_vmem [thread:$0]  %s2, 256, %s46, [#allocation7], 128, 128, 8
    $region13: #{tpu_custom_call.1} parent=1 // pred_fallthru
      _
    // Predicated region
    $region14: #{tpu_custom_call.1} parent=1 // pred_check
      _
    $region15: #{tpu_custom_call.1} parent=1 // pred_check_branch
      %53 = sbr.rel (0) target = $region17
    $region16: #{tpu_custom_call.1} parent=1 // pred_region
      %s55 = ssub.s32 256, 256
      %56 = vsyncadd [#allocation10], %s55
      %s57 = sshll.u32 [#allocation9], 4
      %s58 = int_to_ptr.vmem [resolvable:$true] %s57
      %63 = dma.hbm_to_vmem [thread:$0]  %s3, 256, %s58, [#allocation10], 128, 128, 8
    $region17: #{tpu_custom_call.1} parent=1 // pred_fallthru
      _
    // Predicated region
    $region18: #{tpu_custom_call.1} parent=1 // pred_check
      _
    $region19: #{tpu_custom_call.1} parent=1 // pred_check_branch
      %65 = sbr.rel (0) target = $region21
    $region20: #{tpu_custom_call.1} parent=1 // pred_region
      %s67 = ssub.s32 128, 128
      %68 = vsyncadd [#allocation10], %s67
      %s70 = sshll.u32 [#allocation11], 4
      %s71 = int_to_ptr.vmem [resolvable:$true] %s70
      %73 = dma.hbm_to_vmem [thread:$0]  %s4, 128, %s71, [#allocation10]
    $region21: #{tpu_custom_call.1} parent=1 // pred_fallthru
      _
    // Predicated region
    $region22: #{tpu_custom_call.1} parent=1 // pred_check
      _
    $region23: #{tpu_custom_call.1} parent=1 // pred_check_branch
      %75 = sbr.rel (0) target = $region25
    $region24: #{tpu_custom_call.1} parent=1 // pred_region
      %s77 = ssub.s32 256, 256
      %78 = vsyncadd [#allocation13], %s77
      %s79 = sshll.u32 [#allocation12], 4
      %s80 = int_to_ptr.vmem [resolvable:$true] %s79
      %85 = dma.hbm_to_vmem [thread:$0]  %s5, 256, %s80, [#allocation13], 128, 128, 8
    $region25: #{tpu_custom_call.1} parent=1 // pred_fallthru
      _
    // Predicated region
    $region26: #{tpu_custom_call.1} parent=1 // pred_check
      _
    $region27: #{tpu_custom_call.1} parent=1 // pred_check_branch
      %87 = sbr.rel (0) target = $region29
    $region28: #{tpu_custom_call.1} parent=1 // pred_region
      %88 = dma.done [#allocation4], 128
    $region29: #{tpu_custom_call.1} parent=1 // pred_fallthru
      _
    // Predicated region
    $region30: #{tpu_custom_call.1} parent=1 // pred_check
      _
    $region31: #{tpu_custom_call.1} parent=1 // pred_check_branch
      %90 = sbr.rel (0) target = $region33
    $region32: #{tpu_custom_call.1} parent=1 // pred_region
      %91 = dma.done [#allocation7], 256
    $region33: #{tpu_custom_call.1} parent=1 // pred_fallthru
      _
    // Predicated region
    $region34: #{tpu_custom_call.1} parent=1 // pred_check
      _
    $region35: #{tpu_custom_call.1} parent=1 // pred_check_branch
      %93 = sbr.rel (0) target = $region37
    $region36: #{tpu_custom_call.1} parent=1 // pred_region
      %94 = dma.done [#allocation7], 256
    $region37: #{tpu_custom_call.1} parent=1 // pred_fallthru
      _
    // Predicated region
    $region38: #{tpu_custom_call.1} parent=1 // pred_check
      _
    $region39: #{tpu_custom_call.1} parent=1 // pred_check_branch
      %96 = sbr.rel (0) target = $region41
    $region40: #{tpu_custom_call.1} parent=1 // pred_region
      %97 = dma.done [#allocation10], 256
    $region41: #{tpu_custom_call.1} parent=1 // pred_fallthru
      _
    // Predicated region
    $region42: #{tpu_custom_call.1} parent=1 // pred_check
      _
    $region43: #{tpu_custom_call.1} parent=1 // pred_check_branch
      %99 = sbr.rel (0) target = $region45
    $region44: #{tpu_custom_call.1} parent=1 // pred_region
      %100 = dma.done [#allocation10], 128
    $region45: #{tpu_custom_call.1} parent=1 // pred_fallthru
      _
    // Predicated region
    $region46: #{tpu_custom_call.1} parent=1 // pred_check
      _
    $region47: #{tpu_custom_call.1} parent=1 // pred_check_branch
      %102 = sbr.rel (0) target = $region49
    $region48: #{tpu_custom_call.1} parent=1 // pred_region
      %103 = dma.done [#allocation13], 256
    $region49: #{tpu_custom_call.1} parent=1 // pred_fallthru
      _
    %p104 = scmp.eq.s32.totalorder 0, 0
    // Predicated region
    $region50: #{tpu_custom_call.1} parent=1 // pred_check
      %p105 = pneg %p104
    $region51: #{tpu_custom_call.1} parent=1 // pred_check_branch
      %107 = sbr.rel (%p105) target = $region53
    $region52: #{tpu_custom_call.1} parent=1 // pred_region
      %vm108 = vcmask 64512
      %109 = vst.msk [vmem:[#allocation2] sm:$0xff] %vm108, 0.0
      %110 = vst.msk [vmem:[#allocation2 + $0x8] sm:$0xff] %vm108, 0.0
    $region53: #{tpu_custom_call.1} parent=1 // pred_fallthru
      _
    %v111 = vld [vmem:[#allocation2] sm:$0xff]
    %v112 = vld [vmem:[#allocation2 + $0x8] sm:$0xff]
    %v113 = vld [vmem:[#allocation3] sm:$0xf]
    %v114 = vld [vmem:[#allocation3 + $0x4] sm:$0xf]
    %v115 = vunpack.c.l.bf16 %v113
    %v116 = vunpack.c.l.bf16 %v114
    %v117 = vld [vmem:[#allocation6] sm:$0xff]
    %v118 = vld [vmem:[#allocation6 + $0x8] sm:$0xff]
    %vm119 = vcmask 130048
    %v121 = vsel %vm119, %v115, 0
    %v124 = vsel %vm119, %v116, 0
    %126 = vmatprep.subr.mxu0 0.0
    %127 = vmatpush1.msra.mxu0 %v117
    %128 = vmatprep.subr.mxu0 0.0
    %129 = vmatpush1.msra.mxu0 %v118
    %130 = vmatprep.subr.mxu0 0.0
    %131 = vmatpush1.msra.mxu0 0.0
    %132 = vmatprep.subr.mxu0 0.0
    %133 = vmatpush1.msra.mxu0 0.0
    %134 = vmatprep.subr.mxu0 0.0
    %135 = vmatpush1.msra.mxu0 0.0
    %136 = vmatprep.subr.mxu0 0.0
    %137 = vmatpush1.msra.mxu0 0.0
    %138 = vmatprep.subr.mxu0 0.0
    %139 = vmatpush1.msra.mxu0 0.0
    %140 = vmatprep.subr.mxu0 0.0
    %141 = vmatpush1.msra.mxu0 0.0
    %142 = vmatprep.subr.mxu0 0.0
    %143 = vmatpush1.msra.mxu0 0.0
    %144 = vmatprep.subr.mxu0 0.0
    %145 = vmatpush1.msra.mxu0 0.0
    %146 = vmatprep.subr.mxu0 0.0
    %147 = vmatpush1.msra.mxu0 0.0
    %148 = vmatprep.subr.mxu0 0.0
    %149 = vmatpush1.msra.mxu0 0.0
    %150 = vmatprep.subr.mxu0 0.0
    %151 = vmatpush1.msra.mxu0 0.0
    %152 = vmatprep.subr.mxu0 0.0
    %153 = vmatpush1.msra.mxu0 0.0
    %154 = vmatprep.subr.mxu0 0.0
    %155 = vmatpush1.msra.mxu0 0.0
    %156 = vmatprep.subr.mxu0 0.0
    %157 = vmatpush1.msra.mxu0 0.0
    %158 = vmatprep.subr.mxu0 0.0
    %159 = vmatpush1.msra.mxu0 0.0
    %160 = vmatprep.subr.mxu0 0.0
    %161 = vmatpush1.msra.mxu0 0.0
    %162 = vmatprep.subr.mxu0 0.0
    %163 = vmatpush1.msra.mxu0 0.0
    %164 = vmatprep.subr.mxu0 0.0
    %165 = vmatpush1.msra.mxu0 0.0
    %166 = vmatprep.subr.mxu0 0.0
    %167 = vmatpush1.msra.mxu0 0.0
    %168 = vmatprep.subr.mxu0 0.0
    %169 = vmatpush1.msra.mxu0 0.0
    %170 = vmatprep.subr.mxu0 0.0
    %171 = vmatpush1.msra.mxu0 0.0
    %172 = vmatprep.subr.mxu0 0.0
    %173 = vmatpush1.msra.mxu0 0.0
    %174 = vmatprep.subr.mxu0 0.0
    %175 = vmatpush1.msra.mxu0 0.0
    %176 = vmatprep.subr.mxu0 0.0
    %177 = vmatpush1.msra.mxu0 0.0
    %178 = vmatprep.subr.mxu0 0.0
    %179 = vmatpush1.msra.mxu0 0.0
    %180 = vmatprep.subr.mxu0 0.0
    %181 = vmatpush1.msra.mxu0 0.0
    %182 = vmatprep.subr.mxu0 0.0
    %183 = vmatpush1.msra.mxu0 0.0
    %184 = vmatprep.subr.mxu0 0.0
    %185 = vmatpush1.msra.mxu0 0.0
    %186 = vmatprep.subr.mxu0 0.0
    %187 = vmatpush1.msra.mxu0 0.0
    %188 = vmatprep.subr.mxu0 0.0
    %189 = vmatpush1.msra.mxu0 0.0
    %190 = vmatprep.mubr.f32.mxu0 0.0
    %191 = vmatmul.mubr.f32.gmra.mrb[0].mxu0 %v121
    %v192 = vpop.f32.mrb[0].mxu0
    %v193 = vadd.f32 0.0, %v192
    %v194 = vpop.f32.mrb[0].mxu0
    %195 = vmatprep.mubr.f32.mxu0 0.0
    %196 = vmatmul.mubr.f32.gmra.mrb[0].mxu0 %v124
    %v197 = vpop.f32.mrb[0].mxu0
    %v198 = vadd.f32 0.0, %v197
    %v199 = vpop.f32.mrb[0].mxu0
    %200 = vdwg.mxu0
    %v201 = vadd.f32 %v111, %v193
    %v202 = vadd.f32 %v112, %v198
    %vm203 = vcmask 64512
    %204 = vst.msk [vmem:[#allocation2] sm:$0xff] %vm203, %v201
    %205 = vst.msk [vmem:[#allocation2 + $0x8] sm:$0xff] %vm203, %v202
    // Predicated region
    $region54: #{tpu_custom_call.1} parent=1 // pred_check
      %p206 = pneg %p104
    $region55: #{tpu_custom_call.1} parent=1 // pred_check_branch
      %208 = sbr.rel (%p206) target = $region57
    $region56: #{tpu_custom_call.1} parent=1 // pred_region
      %v209 = vld [vmem:[#allocation9] sm:$0xff]
      %v210 = vld [vmem:[#allocation9 + $0x8] sm:$0xff]
      %v211 = vld [vmem:[#allocation2] sm:$0xff]
      %v212 = vld [vmem:[#allocation2 + $0x8] sm:$0xff]
      %214 = vset.pattern.permute.xlu0 0
      %215 = vperm.xlu0 %214, %v209
      %v216 = vpop.permute.xlu0 %215
      %219 = vset.pattern.permute.xlu0 0
      %220 = vperm.xlu0 %219, %v210
      %v221 = vpop.permute.xlu0 %220
      %v223 = vmul.f32 %v216, %v211
      %v224 = vmul.f32 %v221, %v212
      %v225 = vld [vmem:[#allocation8] sm:$0xff]
      %v226 = vld [vmem:[#allocation8 + $0x8] sm:$0xff]
      %v227 = vadd.f32 %v225, %v223
      %v228 = vadd.f32 %v226, %v224
      %v229 = vld [vmem:[#allocation11] sm:$0xff]
      %v231 = vsel %vm203, %v227, 0
      %v234 = vsel %vm203, %v228, 0
      %236 = vmatprep.subr.mxu0 0.0
      %237 = vmatpush1.msra.mxu0 %v229
      %238 = vmatprep.subr.mxu0 0.0
      %239 = vmatpush1.msra.mxu0 0.0
      %240 = vmatprep.subr.mxu0 0.0
      %241 = vmatpush1.msra.mxu0 0.0
      %242 = vmatprep.subr.mxu0 0.0
      %243 = vmatpush1.msra.mxu0 0.0
      %244 = vmatprep.subr.mxu0 0.0
      %245 = vmatpush1.msra.mxu0 0.0
      %246 = vmatprep.subr.mxu0 0.0
      %247 = vmatpush1.msra.mxu0 0.0
      %248 = vmatprep.subr.mxu0 0.0
      %249 = vmatpush1.msra.mxu0 0.0
      %250 = vmatprep.subr.mxu0 0.0
      %251 = vmatpush1.msra.mxu0 0.0
      %252 = vmatprep.subr.mxu0 0.0
      %253 = vmatpush1.msra.mxu0 0.0
      %254 = vmatprep.subr.mxu0 0.0
      %255 = vmatpush1.msra.mxu0 0.0
      %256 = vmatprep.subr.mxu0 0.0
      %257 = vmatpush1.msra.mxu0 0.0
      %258 = vmatprep.subr.mxu0 0.0
      %259 = vmatpush1.msra.mxu0 0.0
      %260 = vmatprep.subr.mxu0 0.0
      %261 = vmatpush1.msra.mxu0 0.0
      %262 = vmatprep.subr.mxu0 0.0
      %263 = vmatpush1.msra.mxu0 0.0
      %264 = vmatprep.subr.mxu0 0.0
      %265 = vmatpush1.msra.mxu0 0.0
      %266 = vmatprep.subr.mxu0 0.0
      %267 = vmatpush1.msra.mxu0 0.0
      %268 = vmatprep.subr.mxu0 0.0
      %269 = vmatpush1.msra.mxu0 0.0
      %270 = vmatprep.subr.mxu0 0.0
      %271 = vmatpush1.msra.mxu0 0.0
      %272 = vmatprep.subr.mxu0 0.0
      %273 = vmatpush1.msra.mxu0 0.0
      %274 = vmatprep.subr.mxu0 0.0
      %275 = vmatpush1.msra.mxu0 0.0
      %276 = vmatprep.subr.mxu0 0.0
      %277 = vmatpush1.msra.mxu0 0.0
      %278 = vmatprep.subr.mxu0 0.0
      %279 = vmatpush1.msra.mxu0 0.0
      %280 = vmatprep.subr.mxu0 0.0
      %281 = vmatpush1.msra.mxu0 0.0
      %282 = vmatprep.subr.mxu0 0.0
      %283 = vmatpush1.msra.mxu0 0.0
      %284 = vmatprep.subr.mxu0 0.0
      %285 = vmatpush1.msra.mxu0 0.0
      %286 = vmatprep.subr.mxu0 0.0
      %287 = vmatpush1.msra.mxu0 0.0
      %288 = vmatprep.subr.mxu0 0.0
      %289 = vmatpush1.msra.mxu0 0.0
      %290 = vmatprep.subr.mxu0 0.0
      %291 = vmatpush1.msra.mxu0 0.0
      %292 = vmatprep.subr.mxu0 0.0
      %293 = vmatpush1.msra.mxu0 0.0
      %294 = vmatprep.subr.mxu0 0.0
      %295 = vmatpush1.msra.mxu0 0.0
      %296 = vmatprep.subr.mxu0 0.0
      %297 = vmatpush1.msra.mxu0 0.0
      %298 = vmatprep.subr.mxu0 0.0
      %299 = vmatpush1.msra.mxu0 0.0
      %300 = vmatprep.mubr.f32.mxu0 0.0
      %301 = vmatmul.mubr.f32.gmra.mrb[0].mxu0 %v231
      %v302 = vpop.f32.mrb[0].mxu0
      %v303 = vadd.f32 0.0, %v302
      %v304 = vpop.f32.mrb[0].mxu0
      %305 = vmatprep.mubr.f32.mxu0 0.0
      %306 = vmatmul.mubr.f32.gmra.mrb[0].mxu0 %v234
      %v307 = vpop.f32.mrb[0].mxu0
      %v308 = vadd.f32 0.0, %v307
      %v309 = vpop.f32.mrb[0].mxu0
      %310 = vdwg.mxu0
      %v311 = vmax.f32 %v303, 0.0
      %v312 = vmax.f32 %v308, 0.0
      %v313 = vld [vmem:[#allocation12] sm:$0xff]
      %v314 = vld [vmem:[#allocation12 + $0x8] sm:$0xff]
      %v316 = vsel %vm119, %v311, 0
      %v319 = vsel %vm119, %v312, 0
      %321 = vmatprep.subr.mxu0 0.0
      %322 = vmatpush1.msra.mxu0 %v313
      %323 = vmatprep.subr.mxu0 0.0
      %324 = vmatpush1.msra.mxu0 %v314
      %325 = vmatprep.subr.mxu0 0.0
      %326 = vmatpush1.msra.mxu0 0.0
      %327 = vmatprep.subr.mxu0 0.0
      %328 = vmatpush1.msra.mxu0 0.0
      %329 = vmatprep.subr.mxu0 0.0
      %330 = vmatpush1.msra.mxu0 0.0
      %331 = vmatprep.subr.mxu0 0.0
      %332 = vmatpush1.msra.mxu0 0.0
      %333 = vmatprep.subr.mxu0 0.0
      %334 = vmatpush1.msra.mxu0 0.0
      %335 = vmatprep.subr.mxu0 0.0
      %336 = vmatpush1.msra.mxu0 0.0
      %337 = vmatprep.subr.mxu0 0.0
      %338 = vmatpush1.msra.mxu0 0.0
      %339 = vmatprep.subr.mxu0 0.0
      %340 = vmatpush1.msra.mxu0 0.0
      %341 = vmatprep.subr.mxu0 0.0
      %342 = vmatpush1.msra.mxu0 0.0
      %343 = vmatprep.subr.mxu0 0.0
      %344 = vmatpush1.msra.mxu0 0.0
      %345 = vmatprep.subr.mxu0 0.0
      %346 = vmatpush1.msra.mxu0 0.0
      %347 = vmatprep.subr.mxu0 0.0
      %348 = vmatpush1.msra.mxu0 0.0
      %349 = vmatprep.subr.mxu0 0.0
      %350 = vmatpush1.msra.mxu0 0.0
      %351 = vmatprep.subr.mxu0 0.0
      %352 = vmatpush1.msra.mxu0 0.0
      %353 = vmatprep.subr.mxu0 0.0
      %354 = vmatpush1.msra.mxu0 0.0
      %355 = vmatprep.subr.mxu0 0.0
      %356 = vmatpush1.msra.mxu0 0.0
      %357 = vmatprep.subr.mxu0 0.0
      %358 = vmatpush1.msra.mxu0 0.0
      %359 = vmatprep.subr.mxu0 0.0
      %360 = vmatpush1.msra.mxu0 0.0
      %361 = vmatprep.subr.mxu0 0.0
      %362 = vmatpush1.msra.mxu0 0.0
      %363 = vmatprep.subr.mxu0 0.0
      %364 = vmatpush1.msra.mxu0 0.0
      %365 = vmatprep.subr.mxu0 0.0
      %366 = vmatpush1.msra.mxu0 0.0
      %367 = vmatprep.subr.mxu0 0.0
      %368 = vmatpush1.msra.mxu0 0.0
      %369 = vmatprep.subr.mxu0 0.0
      %370 = vmatpush1.msra.mxu0 0.0
      %371 = vmatprep.subr.mxu0 0.0
      %372 = vmatpush1.msra.mxu0 0.0
      %373 = vmatprep.subr.mxu0 0.0
      %374 = vmatpush1.msra.mxu0 0.0
      %375 = vmatprep.subr.mxu0 0.0
      %376 = vmatpush1.msra.mxu0 0.0
      %377 = vmatprep.subr.mxu0 0.0
      %378 = vmatpush1.msra.mxu0 0.0
      %379 = vmatprep.subr.mxu0 0.0
      %380 = vmatpush1.msra.mxu0 0.0
      %381 = vmatprep.subr.mxu0 0.0
      %382 = vmatpush1.msra.mxu0 0.0
      %383 = vmatprep.subr.mxu0 0.0
      %384 = vmatpush1.msra.mxu0 0.0
      %385 = vmatprep.mubr.f32.mxu0 0.0
      %386 = vmatmul.mubr.f32.gmra.mrb[0].mxu0 %v316
      %v387 = vpop.f32.mrb[0].mxu0
      %v388 = vadd.f32 0.0, %v387
      %v389 = vpop.f32.mrb[0].mxu0
      %390 = vmatprep.mubr.f32.mxu0 0.0
      %391 = vmatmul.mubr.f32.gmra.mrb[0].mxu0 %v319
      %v392 = vpop.f32.mrb[0].mxu0
      %v393 = vadd.f32 0.0, %v392
      %v394 = vpop.f32.mrb[0].mxu0
      %395 = vdwg.mxu0
      %396 = vst.msk [vmem:[#allocation14] sm:$0xff] %vm203, %v388
      %397 = vst.msk [vmem:[#allocation14 + $0x8] sm:$0xff] %vm203, %v393
    $region57: #{tpu_custom_call.1} parent=1 // pred_fallthru
      _
    // Predicated region
    $region58: #{tpu_custom_call.1} parent=1 // pred_check
      _
    $region59: #{tpu_custom_call.1} parent=1 // pred_check_branch
      %399 = sbr.rel (0) target = $region61
    $region60: #{tpu_custom_call.1} parent=1 // pred_region
      %s401 = ssub.s32 256, 256
      %402 = vsyncadd [#allocation5], %s401
      %s403 = sshll.u32 [#allocation14], 4
      %s404 = int_to_ptr.vmem [resolvable:$true] %s403
      %409 = dma.vmem_to_hbm [thread:$0]  %s404, 256, %s6, [#allocation5], 128, 128, 8
    $region61: #{tpu_custom_call.1} parent=1 // pred_fallthru
      _
    // Predicated region
    $region62: #{tpu_custom_call.1} parent=1 // pred_check
      _
    $region63: #{tpu_custom_call.1} parent=1 // pred_check_branch
      %411 = sbr.rel (0) target = $region65
    $region64: #{tpu_custom_call.1} parent=1 // pred_region
      %412 = dma.done [#allocation5], 256
    $region65: #{tpu_custom_call.1} parent=1 // pred_fallthru
      _
    %413 = vsyncpa [#allocation4], 1
    %414 = vsyncpa [#allocation7], 1
    %415 = vsyncpa [#allocation10], 1
    %416 = vsyncpa [#allocation13], 1
    %417 = vsyncpa [#allocation5], 1

</llo_original>
